<compile_context>
chip_gen: v6e
topology: v6e:2x2x1
jax: 0.10.0
libtpu: 0.0.40
codegen_flags: <defaults>
</compile_context>

<pallas_src>
import jax
import jax.numpy as jnp
from jax.experimental import pallas as pl
from jax.experimental.pallas import tpu as pltpu

FEAT_IN = 5        # model input features
FEAT_AUG = 6       # features + constant-1 row (fc1 bias fold)
W_ROWS = 120       # 64 + 32 + 16 + 8 packed weight rows
W_COLS = 128
BIAS_ROWS = 72     # b2(32) + b3(16) + b4(8) + w5(8) + b5(1), padded to 72
LAYER_SIZES = [(5, 64), (64, 32), (32, 16), (16, 8), (8, 1)]  # (fan_in, fan_out)


def _mlp_kernel(x_ref, w_ref, bias_ref, o_ref):
    # x_ref:    (6, TILE_B)  rows 0..4 = features (batch on lanes), row 5 = 1.0
    # w_ref:    (120, 128)   packed weights (fc1 bias folded into column 5)
    # bias_ref: (72, 1)      packed b2/b3/b4, w5 (as a column), b5
    x = x_ref[...]
    w = w_ref[...]
    b = bias_ref[...]

    # fc1 (+ b1 folded via the ones row of x): (64, 6) @ (6, B)
    h = jnp.dot(w[0:64, 0:6], x, preferred_element_type=jnp.float32)
    h = jnp.maximum(h, 0.0)

    # fc2: (32, 64) @ (64, B) + b2
    h = jnp.dot(w[64:96, 0:64], h, preferred_element_type=jnp.float32) + b[0:32]
    h = jnp.maximum(h, 0.0)

    # fc3: (16, 32) @ (32, B) + b3
    h = jnp.dot(w[96:112, 0:32], h, preferred_element_type=jnp.float32) + b[32:48]
    h = jnp.maximum(h, 0.0)

    # fc4: (8, 16) @ (16, B) + b4
    h = jnp.dot(w[112:120, 0:16], h, preferred_element_type=jnp.float32) + b[48:56]
    h = jnp.maximum(h, 0.0)

    # fc5 (8 -> 1): weighted sublane reduce on VPU/XLU + b5.
    out = jnp.sum(b[56:64] * h, axis=0, keepdims=True) + b[64:65]
    o_ref[...] = out.astype(o_ref.dtype)


def pack_params(params):
    """Pack PyTorch-layout params into (W_ROWS, W_COLS) weight slab + (BIAS_ROWS, 1) column."""
    (w1, b1), (w2, b2), (w3, b3), (w4, b4), (w5, b5) = [
        (jnp.asarray(w, jnp.float32), jnp.asarray(bb, jnp.float32)) for (w, bb) in params]

    slab = jnp.zeros((W_ROWS, W_COLS), jnp.float32)
    slab = slab.at[0:64, 0:5].set(w1)      # fc1 weight
    slab = slab.at[0:64, 5].set(b1)        # fc1 bias, multiplies the ones row of x
    slab = slab.at[64:96, 0:64].set(w2)    # fc2
    slab = slab.at[96:112, 0:32].set(w3)   # fc3
    slab = slab.at[112:120, 0:16].set(w4)  # fc4

    bias = jnp.zeros((BIAS_ROWS, 1), jnp.float32)
    bias = bias.at[0:32, 0].set(b2)
    bias = bias.at[32:48, 0].set(b3)
    bias = bias.at[48:56, 0].set(b4)
    bias = bias.at[56:64, 0].set(w5.reshape(8))   # fc5 weight as a column (order preserved)
    bias = bias.at[64, 0].set(b5[0])              # fc5 bias
    return slab, bias


def qual_model_forward(x, params, tile_b=4096):
    """x: (B, 5) float32.  params: list of PyTorch-layout (W (out,in), b (out,))."""
    x = jnp.asarray(x, jnp.float32)
    B, fin = x.shape
    assert fin == FEAT_IN

    # Sanitize the lane tile: multiple of 128, capped so f32 intermediates fit
    # comfortably under the scoped-VMEM limit on every TPU generation
    # (v5e 16 MiB default, v7x 64 MiB physical).
    tile_b = max(128, min((int(tile_b) // 128) * 128, 16384))
    b_lane = pl.cdiv(B, 128) * 128
    # Medium/large batches: prefer >= 2 grid steps so the "parallel" axis can
    # feed both v7x TensorCores, while keeping each tile >= 1024 lanes.
    if b_lane >= 2048:
        tile_b = min(tile_b, pl.cdiv(b_lane, 2 * 128) * 128)
    tile_b = min(tile_b, b_lane)
    b_pad = pl.cdiv(b_lane, tile_b) * tile_b
    num_tiles = b_pad // tile_b

    # (B, 5) -> (6, b_pad): batch on lanes, features on sublanes, row 5 = 1.0
    # (folds fc1's bias).  This is the only wrapper-side HBM pass; producers
    # that can hand x in (features, batch) layout avoid even that.
    x_t = jnp.zeros((FEAT_AUG, b_pad), jnp.float32)
    x_t = x_t.at[FEAT_IN, :].set(1.0)
    x_t = x_t.at[:FEAT_IN, :B].set(x.T)

    w_slab, bias_col = pack_params(params)

    out = pl.pallas_call(
        _mlp_kernel,
        out_shape=jax.ShapeDtypeStruct((1, b_pad), jnp.float32),
        grid=(num_tiles,),
        in_specs=[
            pl.BlockSpec((FEAT_AUG, tile_b), lambda i: (0, i)),
            # Constant index maps: weight slab / bias column stay VMEM-resident
            # across all batch tiles.
            pl.BlockSpec((W_ROWS, W_COLS), lambda i: (0, 0)),
            pl.BlockSpec((BIAS_ROWS, 1), lambda i: (0, 0)),
        ],
        out_specs=pl.BlockSpec((1, tile_b), lambda i: (0, i)),
        compiler_params=pltpu.CompilerParams(
            dimension_semantics=("parallel",),
            vmem_limit_bytes=32 * 1024 * 1024,
        ),
    )(x_t, w_slab, bias_col)

    # (1, b_pad) -> (B, 1), dropping batch padding.
    return out[:, :B].T


def init_params(key):
    """Deterministic init mirroring nn.Linear default (uniform +/- 1/sqrt(fan_in)).

    Returns list of (W (out, in), b (out,)) in float32 -- native PyTorch layout.
    """
    params = []
    for i, (fan_in, fan_out) in enumerate(LAYER_SIZES):
        kw, kb = jax.random.split(jax.random.fold_in(key, i))
        bound = 1.0 / (fan_in ** 0.5)
        w = jax.random.uniform(kw, (fan_out, fan_in), jnp.float32, -bound, bound)
        b = jax.random.uniform(kb, (fan_out,), jnp.float32, -bound, bound)
        params.append((w, b))
    return params


def reference_forward(x, params):
    h = x
    for i, (w, b) in enumerate(params):
        h = h @ w.T + b
        if i < len(params) - 1:
            h = jnp.maximum(h, 0.0)
    return h


if __name__ == "__main__":
    key = jax.random.PRNGKey(0)
    k_x, k_p = jax.random.split(key)
    params = init_params(k_p)

    # Small batch (single 128-lane tile, batch padding path).
    B = 8
    x = jax.random.normal(k_x, (B, FEAT_IN), dtype=jnp.float32)
    out = jax.block_until_ready(qual_model_forward(x, params))
    ref = reference_forward(x, params)
    assert out.shape == (B, 1), out.shape
    assert jnp.allclose(out, ref, atol=1e-5, rtol=1e-5), (out, ref)

    # Multi-tile grid + batch padding (3 tiles of 256 lanes).
    B2 = 640
    x2 = jax.random.normal(jax.random.fold_in(k_x, 1), (B2, FEAT_IN),
                           dtype=jnp.float32)
    out2 = jax.block_until_ready(qual_model_forward(x2, params, tile_b=256))
    ref2 = reference_forward(x2, params)
    assert out2.shape == (B2, 1), out2.shape
    assert jnp.allclose(out2, ref2, atol=1e-5, rtol=1e-5), (out2, ref2)

    print("KERNEL_OK")
</pallas_src>

<mosaic_0001>
module attributes {stable_mosaic.version = 11 : i64} {
  func.func @_mlp_kernel(%arg0: i32, %arg1: memref<6x128xf32, #tpu.memory_space<vmem>>, %arg2: memref<120x128xf32, #tpu.memory_space<vmem>>, %arg3: memref<72x1xf32, #tpu.memory_space<vmem>>, %arg4: memref<1x128xf32, #tpu.memory_space<vmem>>) attributes {dimension_semantics = [#tpu.dimension_semantics<parallel>], iteration_bounds = array<i64: 1>, scalar_prefetch = 0 : i64, scratch_operands = 0 : i64, tpu.core_type = #tpu.core_type<tc>, window_params = [{transform_indices = @transform_0, window_bounds = array<i64: 6, 128>}, {pipeline_mode = #tpu.pipeline_mode<synchronous>, transform_indices = @transform_1, window_bounds = array<i64: 120, 128>}, {pipeline_mode = #tpu.pipeline_mode<synchronous>, transform_indices = @transform_2, window_bounds = array<i64: 72, 1>}, {transform_indices = @transform_3, window_bounds = array<i64: 1, 128>}]} {
    %c0 = arith.constant 0 : index
    %c0_0 = arith.constant 0 : index
    %0 = vector.load %arg1[%c0, %c0_0] : memref<6x128xf32, #tpu.memory_space<vmem>>, vector<6x128xf32>
    %c0_1 = arith.constant 0 : index
    %c0_2 = arith.constant 0 : index
    %1 = vector.load %arg2[%c0_1, %c0_2] : memref<120x128xf32, #tpu.memory_space<vmem>>, vector<120x128xf32>
    %c0_3 = arith.constant 0 : index
    %c0_4 = arith.constant 0 : index
    %2 = vector.load %arg3[%c0_3, %c0_4] : memref<72x1xf32, #tpu.memory_space<vmem>>, vector<72x1xf32>
    %3 = vector.extract_strided_slice %1 {offsets = [0, 0], sizes = [64, 6], strides = [1, 1]} : vector<120x128xf32> to vector<64x6xf32>
    %cst = arith.constant dense<0.000000e+00> : vector<64x128xf32>
    %4 = tpu.matmul %3, %0, %cst {dimension_numbers = #tpu.dot_dimension_numbers<[1], [0], [0], [1], [0, 0, 1, 1], [], []>} : vector<64x6xf32>, vector<6x128xf32>, vector<64x128xf32> -> vector<64x128xf32>
    %cst_5 = arith.constant 0.000000e+00 : f32
    %5 = vector.broadcast %cst_5 : f32 to vector<64x128xf32>
    %6 = arith.maximumf %4, %5 : vector<64x128xf32>
    %7 = vector.extract_strided_slice %1 {offsets = [64, 0], sizes = [32, 64], strides = [1, 1]} : vector<120x128xf32> to vector<32x64xf32>
    %cst_6 = arith.constant dense<0.000000e+00> : vector<32x128xf32>
    %8 = tpu.matmul %7, %6, %cst_6 {dimension_numbers = #tpu.dot_dimension_numbers<[1], [0], [0], [1], [0, 0, 1, 1], [], []>} : vector<32x64xf32>, vector<64x128xf32>, vector<32x128xf32> -> vector<32x128xf32>
    %9 = vector.extract_strided_slice %2 {offsets = [0, 0], sizes = [32, 1], strides = [1, 1]} : vector<72x1xf32> to vector<32x1xf32>
    %10 = vector.broadcast %9 : vector<32x1xf32> to vector<32x128xf32>
    %11 = arith.addf %8, %10 : vector<32x128xf32>
    %cst_7 = arith.constant 0.000000e+00 : f32
    %12 = vector.broadcast %cst_7 : f32 to vector<32x128xf32>
    %13 = arith.maximumf %11, %12 : vector<32x128xf32>
    %14 = vector.extract_strided_slice %1 {offsets = [96, 0], sizes = [16, 32], strides = [1, 1]} : vector<120x128xf32> to vector<16x32xf32>
    %cst_8 = arith.constant dense<0.000000e+00> : vector<16x128xf32>
    %15 = tpu.matmul %14, %13, %cst_8 {dimension_numbers = #tpu.dot_dimension_numbers<[1], [0], [0], [1], [0, 0, 1, 1], [], []>} : vector<16x32xf32>, vector<32x128xf32>, vector<16x128xf32> -> vector<16x128xf32>
    %16 = vector.extract_strided_slice %2 {offsets = [32, 0], sizes = [16, 1], strides = [1, 1]} : vector<72x1xf32> to vector<16x1xf32>
    %17 = vector.broadcast %16 : vector<16x1xf32> to vector<16x128xf32>
    %18 = arith.addf %15, %17 : vector<16x128xf32>
    %cst_9 = arith.constant 0.000000e+00 : f32
    %19 = vector.broadcast %cst_9 : f32 to vector<16x128xf32>
    %20 = arith.maximumf %18, %19 : vector<16x128xf32>
    %21 = vector.extract_strided_slice %1 {offsets = [112, 0], sizes = [8, 16], strides = [1, 1]} : vector<120x128xf32> to vector<8x16xf32>
    %cst_10 = arith.constant dense<0.000000e+00> : vector<8x128xf32>
    %22 = tpu.matmul %21, %20, %cst_10 {dimension_numbers = #tpu.dot_dimension_numbers<[1], [0], [0], [1], [0, 0, 1, 1], [], []>} : vector<8x16xf32>, vector<16x128xf32>, vector<8x128xf32> -> vector<8x128xf32>
    %23 = vector.extract_strided_slice %2 {offsets = [48, 0], sizes = [8, 1], strides = [1, 1]} : vector<72x1xf32> to vector<8x1xf32>
    %24 = vector.broadcast %23 : vector<8x1xf32> to vector<8x128xf32>
    %25 = arith.addf %22, %24 : vector<8x128xf32>
    %cst_11 = arith.constant 0.000000e+00 : f32
    %26 = vector.broadcast %cst_11 : f32 to vector<8x128xf32>
    %27 = arith.maximumf %25, %26 : vector<8x128xf32>
    %28 = vector.extract_strided_slice %2 {offsets = [56, 0], sizes = [8, 1], strides = [1, 1]} : vector<72x1xf32> to vector<8x1xf32>
    %29 = vector.broadcast %28 : vector<8x1xf32> to vector<8x128xf32>
    %30 = arith.mulf %29, %27 : vector<8x128xf32>
    %cst_12 = arith.constant dense<0.000000e+00> : vector<128xf32>
    %31 = vector.multi_reduction <add>, %30, %cst_12 [0] : vector<8x128xf32> to vector<128xf32>
    %32 = vector.shape_cast %31 : vector<128xf32> to vector<1x128xf32>
    %33 = vector.extract_strided_slice %2 {offsets = [64, 0], sizes = [1, 1], strides = [1, 1]} : vector<72x1xf32> to vector<1x1xf32>
    %34 = vector.broadcast %33 : vector<1x1xf32> to vector<1x128xf32>
    %35 = arith.addf %32, %34 : vector<1x128xf32>
    %c0_13 = arith.constant 0 : index
    %c0_14 = arith.constant 0 : index
    %36 = vector.load %arg4[%c0_13, %c0_14] : memref<1x128xf32, #tpu.memory_space<vmem>>, vector<1x128xf32>
    tpu.vector_store %arg4[%c0_13, %c0_14], %35 {strides = array<i32>} : memref<1x128xf32, #tpu.memory_space<vmem>>, vector<1x128xf32>,
    return
  }
  func.func @transform_0(%arg0: i32) -> (i32, i32) {
    %c0_i32 = arith.constant 0 : i32
    %c0_i32_0 = arith.constant 0 : i32
    return %c0_i32, %arg0 : i32, i32
  }
  func.func @transform_1(%arg0: i32) -> (i32, i32) {
    %c0_i32 = arith.constant 0 : i32
    %c0_i32_0 = arith.constant 0 : i32
    %c0_i32_1 = arith.constant 0 : i32
    return %c0_i32, %c0_i32_0 : i32, i32
  }
  func.func @transform_2(%arg0: i32) -> (i32, i32) {
    %c0_i32 = arith.constant 0 : i32
    %c0_i32_0 = arith.constant 0 : i32
    %c0_i32_1 = arith.constant 0 : i32
    return %c0_i32, %c0_i32_0 : i32, i32
  }
  func.func @transform_3(%arg0: i32) -> (i32, i32) {
    %c0_i32 = arith.constant 0 : i32
    %c0_i32_0 = arith.constant 0 : i32
    return %c0_i32, %arg0 : i32, i32
  }
}

</mosaic_0001>

<llo_original>
// kernel: tpu_custom_call.1
$region0: #{tpu_custom_call.1}
  #allocation0 [shape = 'u32[]', space=smem, size = 0x4, offset = 0x4, fixed_abs, tag = 'smem constant byte address 0x4 - core index']
  #allocation1 [shape = 'u32[144,128]{1,0:T(1,128)}', space=vmem, size = 0x12000, scoped, tag = 'internal scratch']
  %s0 = inlined_call_operand.vmem [shape: f32[6,128], index: 0, kind: input, shape index: {}]
  %s1 = inlined_call_operand.hbm [shape: f32[120,128], index: 1, kind: input, shape index: {}]
  %s2 = inlined_call_operand.vmem [shape: f32[72,1], index: 2, kind: input, shape index: {}]
  %s3 = inlined_call_operand.hbm [shape: f32[1,128], index: 3, kind: output, shape index: {}]
  %s4 = sld [smem:[#allocation0]]
  $region26: #{tpu_custom_call.1} parent=0
    _
  %s6 = ssub.s32 1, %s4
  %s7 = scalar_select 0, %s6, %s4
  $region1: #{tpu_custom_call.1} parent=0
    #allocation2 [shape = 'u8[61440]{0}', space=vmem, size = 0xf000, scoped, tag = 'input window, operand 1, single buffered']
    #allocation3 [shape = 's32[1]{0}', space=sflag, size = 0x4, scoped, tag = 'scoped memory for tpu_custom_call.1']
    #allocation4 [shape = 's32[1]{0}', space=sflag, size = 0x4, scoped, tag = 'scoped memory for tpu_custom_call.1']
    #allocation5 [shape = 'u8[512]{0}', space=vmem, size = 0x400, scoped, tag = 'output window, operand 0, single buffered']
    %8 = vsyncpa [#allocation3], 0
    %9 = vsyncpa [#allocation4], 0
    // Predicated region
    $region2: #{tpu_custom_call.1} parent=1 // pred_check
      _
    $region3: #{tpu_custom_call.1} parent=1 // pred_check_branch
      %11 = sbr.rel (0) target = $region5
    $region4: #{tpu_custom_call.1} parent=1 // pred_region
      _
    $region5: #{tpu_custom_call.1} parent=1 // pred_fallthru
      _
    // Predicated region
    $region6: #{tpu_custom_call.1} parent=1 // pred_check
      _
    $region7: #{tpu_custom_call.1} parent=1 // pred_check_branch
      %13 = sbr.rel (0) target = $region9
    $region8: #{tpu_custom_call.1} parent=1 // pred_region
      %s15 = ssub.s32 1920, 1920
      %16 = vsyncadd [#allocation3], %s15
      %s17 = sshll.u32 [#allocation2], 4
      %s18 = int_to_ptr.vmem [resolvable:$true] %s17
      %23 = dma.hbm_to_vmem [thread:$0]  %s1, 1920, %s18, [#allocation3], 128, 128, 8
    $region9: #{tpu_custom_call.1} parent=1 // pred_fallthru
      _
    // Predicated region
    $region10: #{tpu_custom_call.1} parent=1 // pred_check
      _
    $region11: #{tpu_custom_call.1} parent=1 // pred_check_branch
      %25 = sbr.rel (0) target = $region13
    $region12: #{tpu_custom_call.1} parent=1 // pred_region
      _
    $region13: #{tpu_custom_call.1} parent=1 // pred_fallthru
      _
    // Predicated region
    $region14: #{tpu_custom_call.1} parent=1 // pred_check
      _
    $region15: #{tpu_custom_call.1} parent=1 // pred_check_branch
      %27 = sbr.rel (0) target = $region17
    $region16: #{tpu_custom_call.1} parent=1 // pred_region
      %28 = dma.done [#allocation3], 1920
    $region17: #{tpu_custom_call.1} parent=1 // pred_fallthru
      _
    %v29 = vld [vmem:[%s0] sm:$0x3f]
    %v30 = vld [vmem:[#allocation2] sm:$0xff]
    %v31 = vld [vmem:[#allocation2 + $0x8] sm:$0xff]
    %v32 = vld [vmem:[#allocation2 + $0x10] sm:$0xff]
    %v33 = vld [vmem:[#allocation2 + $0x18] sm:$0xff]
    %v34 = vld [vmem:[#allocation2 + $0x20] sm:$0xff]
    %v35 = vld [vmem:[#allocation2 + $0x28] sm:$0xff]
    %v36 = vld [vmem:[#allocation2 + $0x30] sm:$0xff]
    %v37 = vld [vmem:[#allocation2 + $0x38] sm:$0xff]
    %v38 = vld [vmem:[#allocation2 + $0x40] sm:$0xff]
    %v39 = vld [vmem:[#allocation2 + $0x48] sm:$0xff]
    %v40 = vld [vmem:[#allocation2 + $0x50] sm:$0xff]
    %v41 = vld [vmem:[#allocation2 + $0x58] sm:$0xff]
    %v42 = vld [vmem:[#allocation2 + $0x60] sm:$0xff]
    %v43 = vld [vmem:[#allocation2 + $0x68] sm:$0xff]
    %v44 = vld [vmem:[#allocation2 + $0x70] sm:$0xff]
    %v45 = vld [vmem:[%s2] sm:$0xff]
    %v46 = vld [vmem:[%s2 + $0x8] sm:$0xff]
    %v47 = vld [vmem:[%s2 + $0x10] sm:$0xff]
    %v48 = vld [vmem:[%s2 + $0x18] sm:$0xff]
    %v49 = vld [vmem:[%s2 + $0x20] sm:$0xff]
    %v50 = vld [vmem:[%s2 + $0x28] sm:$0xff]
    %v51 = vld [vmem:[%s2 + $0x30] sm:$0xff]
    %v52 = vld [vmem:[%s2 + $0x38] sm:$0xff]
    %v53 = vld [vmem:[%s2 + $0x40] sm:$0xff]
    %vm54 = vcmask 48128
    %v56 = vsel %vm54, %v30, 0
    %v59 = vsel %vm54, %v31, 0
    %v62 = vsel %vm54, %v32, 0
    %v65 = vsel %vm54, %v33, 0
    %v68 = vsel %vm54, %v34, 0
    %v71 = vsel %vm54, %v35, 0
    %v74 = vsel %vm54, %v36, 0
    %v77 = vsel %vm54, %v37, 0
    %vm79 = vcmask 1045504
    %v81 = vsel %vm79, %v29, 0
    %83 = vmatprep.subr.mxu0 0.0
    %84 = vmatpush1.msra.mxu0 0.0
    %85 = vmatprep.subr.mxu0 0.0
    %86 = vmatpush1.msra.mxu0 0.0
    %87 = vmatprep.subr.mxu0 0.0
    %88 = vmatpush1.msra.mxu0 0.0
    %89 = vmatprep.subr.mxu0 0.0
    %90 = vmatpush1.msra.mxu0 0.0
    %91 = vmatprep.subr.mxu0 0.0
    %92 = vmatpush1.msra.mxu0 0.0
    %93 = vmatprep.subr.mxu0 0.0
    %94 = vmatpush1.msra.mxu0 0.0
    %95 = vmatprep.subr.mxu0 0.0
    %96 = vmatpush1.msra.mxu0 0.0
    %97 = vmatprep.subr.mxu0 0.0
    %98 = vmatpush1.msra.mxu0 0.0
    %99 = vmatprep.subr.mxu0 0.0
    %100 = vmatpush1.msra.mxu0 0.0
    %101 = vmatprep.subr.mxu0 0.0
    %102 = vmatpush1.msra.mxu0 0.0
    %103 = vmatprep.subr.mxu0 0.0
    %104 = vmatpush1.msra.mxu0 0.0
    %105 = vmatprep.subr.mxu0 0.0
    %106 = vmatpush1.msra.mxu0 0.0
    %107 = vmatprep.subr.mxu0 0.0
    %108 = vmatpush1.msra.mxu0 0.0
    %109 = vmatprep.subr.mxu0 0.0
    %110 = vmatpush1.msra.mxu0 0.0
    %111 = vmatprep.subr.mxu0 0.0
    %112 = vmatpush1.msra.mxu0 0.0
    %113 = vmatprep.subr.mxu0 0.0
    %114 = vmatpush1.msra.mxu0 %v81
    %115 = vmatprep.subr.mxu0 0.0
    %116 = vmatpush2.msra.mxu0 0.0
    %117 = vmatprep.subr.mxu0 0.0
    %118 = vmatpush2.msra.mxu0 0.0
    %119 = vmatprep.subr.mxu0 0.0
    %120 = vmatpush2.msra.mxu0 0.0
    %121 = vmatprep.subr.mxu0 0.0
    %122 = vmatpush2.msra.mxu0 0.0
    %123 = vmatprep.subr.mxu0 0.0
    %124 = vmatpush2.msra.mxu0 0.0
    %125 = vmatprep.subr.mxu0 0.0
    %126 = vmatpush2.msra.mxu0 0.0
    %127 = vmatprep.subr.mxu0 0.0
    %128 = vmatpush2.msra.mxu0 0.0
    %129 = vmatprep.subr.mxu0 0.0
    %130 = vmatpush2.msra.mxu0 0.0
    %131 = vmatprep.subr.mxu0 0.0
    %132 = vmatpush2.msra.mxu0 0.0
    %133 = vmatprep.subr.mxu0 0.0
    %134 = vmatpush2.msra.mxu0 0.0
    %135 = vmatprep.subr.mxu0 0.0
    %136 = vmatpush2.msra.mxu0 0.0
    %137 = vmatprep.subr.mxu0 0.0
    %138 = vmatpush2.msra.mxu0 0.0
    %139 = vmatprep.subr.mxu0 0.0
    %140 = vmatpush2.msra.mxu0 0.0
    %141 = vmatprep.subr.mxu0 0.0
    %142 = vmatpush2.msra.mxu0 0.0
    %143 = vmatprep.subr.mxu0 0.0
    %144 = vmatpush2.msra.mxu0 0.0
    %145 = vmatprep.subr.mxu0 0.0
    %146 = vmatpush2.msra.mxu0 0.0
    %147 = vmatprep.mubr.f32.mxu0 0.0
    %148 = vmatmul.mubr.f32.gmra.mxu0 %v56
    %v149 = vpop.f32.mrf.mxu0
    %v150 = vadd.f32 0.0, %v149
    %v151 = vpop.f32.mrf.mxu0
    %152 = vmatprep.mubr.f32.mxu0 0.0
    %153 = vmatmul.mubr.f32.gmra.mxu0 %v59
    %v154 = vpop.f32.mrf.mxu0
    %v155 = vadd.f32 0.0, %v154
    %v156 = vpop.f32.mrf.mxu0
    %157 = vmatprep.mubr.f32.mxu0 0.0
    %158 = vmatmul.mubr.f32.gmra.mxu0 %v62
    %v159 = vpop.f32.mrf.mxu0
    %v160 = vadd.f32 0.0, %v159
    %v161 = vpop.f32.mrf.mxu0
    %162 = vmatprep.mubr.f32.mxu0 0.0
    %163 = vmatmul.mubr.f32.gmra.mxu0 %v65
    %v164 = vpop.f32.mrf.mxu0
    %v165 = vadd.f32 0.0, %v164
    %v166 = vpop.f32.mrf.mxu0
    %167 = vmatprep.mubr.f32.mxu0 0.0
    %168 = vmatmul.mubr.f32.gmra.mxu0 %v68
    %v169 = vpop.f32.mrf.mxu0
    %v170 = vadd.f32 0.0, %v169
    %v171 = vpop.f32.mrf.mxu0
    %172 = vmatprep.mubr.f32.mxu0 0.0
    %173 = vmatmul.mubr.f32.gmra.mxu0 %v71
    %v174 = vpop.f32.mrf.mxu0
    %v175 = vadd.f32 0.0, %v174
    %v176 = vpop.f32.mrf.mxu0
    %177 = vmatprep.mubr.f32.mxu0 0.0
    %178 = vmatmul.mubr.f32.gmra.mxu0 %v74
    %v179 = vpop.f32.mrf.mxu0
    %v180 = vadd.f32 0.0, %v179
    %v181 = vpop.f32.mrf.mxu0
    %182 = vmatprep.mubr.f32.mxu0 0.0
    %183 = vmatmul.mubr.f32.gmra.mxu0 %v77
    %v184 = vpop.f32.mrf.mxu0
    %v185 = vadd.f32 0.0, %v184
    %v186 = vpop.f32.mrf.mxu0
    %187 = vdwg.mxu0
    %v188 = vmax.f32 %v150, 0.0
    %v189 = vmax.f32 %v155, 0.0
    %v190 = vmax.f32 %v160, 0.0
    %v191 = vmax.f32 %v165, 0.0
    %v192 = vmax.f32 %v170, 0.0
    %v193 = vmax.f32 %v175, 0.0
    %v194 = vmax.f32 %v180, 0.0
    %v195 = vmax.f32 %v185, 0.0
    %197 = vset.pattern.permute.xlu0 0
    %198 = vperm.xlu0 %197, %v45
    %v199 = vpop.permute.xlu0 %198
    %202 = vset.pattern.permute.xlu0 0
    %203 = vperm.xlu0 %202, %v46
    %v204 = vpop.permute.xlu0 %203
    %207 = vset.pattern.permute.xlu0 0
    %208 = vperm.xlu0 %207, %v47
    %v209 = vpop.permute.xlu0 %208
    %212 = vset.pattern.permute.xlu0 0
    %213 = vperm.xlu0 %212, %v48
    %v214 = vpop.permute.xlu0 %213
    %vm216 = vcmask 523264
    %v218 = vsel %vm216, %v38, 0
    %v221 = vsel %vm216, %v39, 0
    %v224 = vsel %vm216, %v40, 0
    %v227 = vsel %vm216, %v41, 0
    %229 = vmatprep.subr.mxu0 0.0
    %230 = vmatpush1.msra.mxu0 0.0
    %231 = vmatprep.subr.mxu0 0.0
    %232 = vmatpush1.msra.mxu0 0.0
    %233 = vmatprep.subr.mxu0 0.0
    %234 = vmatpush1.msra.mxu0 0.0
    %235 = vmatprep.subr.mxu0 0.0
    %236 = vmatpush1.msra.mxu0 0.0
    %237 = vmatprep.subr.mxu0 0.0
    %238 = vmatpush1.msra.mxu0 0.0
    %239 = vmatprep.subr.mxu0 0.0
    %240 = vmatpush1.msra.mxu0 0.0
    %241 = vmatprep.subr.mxu0 0.0
    %242 = vmatpush1.msra.mxu0 0.0
    %243 = vmatprep.subr.mxu0 0.0
    %244 = vmatpush1.msra.mxu0 0.0
    %245 = vmatprep.subr.mxu0 0.0
    %246 = vmatpush1.msra.mxu0 %v195
    %247 = vmatprep.subr.mxu0 0.0
    %248 = vmatpush1.msra.mxu0 %v194
    %249 = vmatprep.subr.mxu0 0.0
    %250 = vmatpush1.msra.mxu0 %v193
    %251 = vmatprep.subr.mxu0 0.0
    %252 = vmatpush1.msra.mxu0 %v192
    %253 = vmatprep.subr.mxu0 0.0
    %254 = vmatpush1.msra.mxu0 %v191
    %255 = vmatprep.subr.mxu0 0.0
    %256 = vmatpush1.msra.mxu0 %v190
    %257 = vmatprep.subr.mxu0 0.0
    %258 = vmatpush1.msra.mxu0 %v189
    %259 = vmatprep.subr.mxu0 0.0
    %260 = vmatpush1.msra.mxu0 %v188
    %261 = vmatprep.subr.mxu0 0.0
    %262 = vmatpush2.msra.mxu0 0.0
    %263 = vmatprep.subr.mxu0 0.0
    %264 = vmatpush2.msra.mxu0 0.0
    %265 = vmatprep.subr.mxu0 0.0
    %266 = vmatpush2.msra.mxu0 0.0
    %267 = vmatprep.subr.mxu0 0.0
    %268 = vmatpush2.msra.mxu0 0.0
    %269 = vmatprep.subr.mxu0 0.0
    %270 = vmatpush2.msra.mxu0 0.0
    %271 = vmatprep.subr.mxu0 0.0
    %272 = vmatpush2.msra.mxu0 0.0
    %273 = vmatprep.subr.mxu0 0.0
    %274 = vmatpush2.msra.mxu0 0.0
    %275 = vmatprep.subr.mxu0 0.0
    %276 = vmatpush2.msra.mxu0 0.0
    %277 = vmatprep.subr.mxu0 0.0
    %278 = vmatpush2.msra.mxu0 0.0
    %279 = vmatprep.subr.mxu0 0.0
    %280 = vmatpush2.msra.mxu0 0.0
    %281 = vmatprep.subr.mxu0 0.0
    %282 = vmatpush2.msra.mxu0 0.0
    %283 = vmatprep.subr.mxu0 0.0
    %284 = vmatpush2.msra.mxu0 0.0
    %285 = vmatprep.subr.mxu0 0.0
    %286 = vmatpush2.msra.mxu0 0.0
    %287 = vmatprep.subr.mxu0 0.0
    %288 = vmatpush2.msra.mxu0 0.0
    %289 = vmatprep.subr.mxu0 0.0
    %290 = vmatpush2.msra.mxu0 0.0
    %291 = vmatprep.subr.mxu0 0.0
    %292 = vmatpush2.msra.mxu0 0.0
    %293 = vmatprep.mubr.f32.mxu0 0.0
    %294 = vmatmul.mubr.f32.gmra.mxu0 %v218
    %v295 = vpop.f32.mrf.mxu0
    %v296 = vadd.f32 %v199, %v295
    %v297 = vpop.f32.mrf.mxu0
    %298 = vmatprep.mubr.f32.mxu0 0.0
    %299 = vmatmul.mubr.f32.gmra.mxu0 %v221
    %v300 = vpop.f32.mrf.mxu0
    %v301 = vadd.f32 %v204, %v300
    %v302 = vpop.f32.mrf.mxu0
    %303 = vmatprep.mubr.f32.mxu0 0.0
    %304 = vmatmul.mubr.f32.gmra.mxu0 %v224
    %v305 = vpop.f32.mrf.mxu0
    %v306 = vadd.f32 %v209, %v305
    %v307 = vpop.f32.mrf.mxu0
    %308 = vmatprep.mubr.f32.mxu0 0.0
    %309 = vmatmul.mubr.f32.gmra.mxu0 %v227
    %v310 = vpop.f32.mrf.mxu0
    %v311 = vadd.f32 %v214, %v310
    %v312 = vpop.f32.mrf.mxu0
    %313 = vdwg.mxu0
    %v314 = vmax.f32 %v296, 0.0
    %v315 = vmax.f32 %v301, 0.0
    %v316 = vmax.f32 %v306, 0.0
    %v317 = vmax.f32 %v311, 0.0
    %319 = vset.pattern.permute.xlu0 0
    %320 = vperm.xlu0 %319, %v49
    %v321 = vpop.permute.xlu0 %320
    %324 = vset.pattern.permute.xlu0 0
    %325 = vperm.xlu0 %324, %v50
    %v326 = vpop.permute.xlu0 %325
    %vm328 = vcmask 261120
    %v330 = vsel %vm328, %v42, 0
    %v333 = vsel %vm328, %v43, 0
    %335 = vmatprep.subr.mxu0 0.0
    %336 = vmatpush1.msra.mxu0 0.0
    %337 = vmatprep.subr.mxu0 0.0
    %338 = vmatpush1.msra.mxu0 0.0
    %339 = vmatprep.subr.mxu0 0.0
    %340 = vmatpush1.msra.mxu0 0.0
    %341 = vmatprep.subr.mxu0 0.0
    %342 = vmatpush1.msra.mxu0 0.0
    %343 = vmatprep.subr.mxu0 0.0
    %344 = vmatpush1.msra.mxu0 0.0
    %345 = vmatprep.subr.mxu0 0.0
    %346 = vmatpush1.msra.mxu0 0.0
    %347 = vmatprep.subr.mxu0 0.0
    %348 = vmatpush1.msra.mxu0 0.0
    %349 = vmatprep.subr.mxu0 0.0
    %350 = vmatpush1.msra.mxu0 0.0
    %351 = vmatprep.subr.mxu0 0.0
    %352 = vmatpush1.msra.mxu0 0.0
    %353 = vmatprep.subr.mxu0 0.0
    %354 = vmatpush1.msra.mxu0 0.0
    %355 = vmatprep.subr.mxu0 0.0
    %356 = vmatpush1.msra.mxu0 0.0
    %357 = vmatprep.subr.mxu0 0.0
    %358 = vmatpush1.msra.mxu0 0.0
    %359 = vmatprep.subr.mxu0 0.0
    %360 = vmatpush1.msra.mxu0 %v317
    %361 = vmatprep.subr.mxu0 0.0
    %362 = vmatpush1.msra.mxu0 %v316
    %363 = vmatprep.subr.mxu0 0.0
    %364 = vmatpush1.msra.mxu0 %v315
    %365 = vmatprep.subr.mxu0 0.0
    %366 = vmatpush1.msra.mxu0 %v314
    %367 = vmatprep.subr.mxu0 0.0
    %368 = vmatpush2.msra.mxu0 0.0
    %369 = vmatprep.subr.mxu0 0.0
    %370 = vmatpush2.msra.mxu0 0.0
    %371 = vmatprep.subr.mxu0 0.0
    %372 = vmatpush2.msra.mxu0 0.0
    %373 = vmatprep.subr.mxu0 0.0
    %374 = vmatpush2.msra.mxu0 0.0
    %375 = vmatprep.subr.mxu0 0.0
    %376 = vmatpush2.msra.mxu0 0.0
    %377 = vmatprep.subr.mxu0 0.0
    %378 = vmatpush2.msra.mxu0 0.0
    %379 = vmatprep.subr.mxu0 0.0
    %380 = vmatpush2.msra.mxu0 0.0
    %381 = vmatprep.subr.mxu0 0.0
    %382 = vmatpush2.msra.mxu0 0.0
    %383 = vmatprep.subr.mxu0 0.0
    %384 = vmatpush2.msra.mxu0 0.0
    %385 = vmatprep.subr.mxu0 0.0
    %386 = vmatpush2.msra.mxu0 0.0
    %387 = vmatprep.subr.mxu0 0.0
    %388 = vmatpush2.msra.mxu0 0.0
    %389 = vmatprep.subr.mxu0 0.0
    %390 = vmatpush2.msra.mxu0 0.0
    %391 = vmatprep.subr.mxu0 0.0
    %392 = vmatpush2.msra.mxu0 0.0
    %393 = vmatprep.subr.mxu0 0.0
    %394 = vmatpush2.msra.mxu0 0.0
    %395 = vmatprep.subr.mxu0 0.0
    %396 = vmatpush2.msra.mxu0 0.0
    %397 = vmatprep.subr.mxu0 0.0
    %398 = vmatpush2.msra.mxu0 0.0
    %399 = vmatprep.mubr.f32.mxu0 0.0
    %400 = vmatmul.mubr.f32.gmra.mxu0 %v330
    %v401 = vpop.f32.mrf.mxu0
    %v402 = vadd.f32 %v321, %v401
    %v403 = vpop.f32.mrf.mxu0
    %404 = vmatprep.mubr.f32.mxu0 0.0
    %405 = vmatmul.mubr.f32.gmra.mxu0 %v333
    %v406 = vpop.f32.mrf.mxu0
    %v407 = vadd.f32 %v326, %v406
    %v408 = vpop.f32.mrf.mxu0
    %409 = vdwg.mxu0
    %v410 = vmax.f32 %v402, 0.0
    %v411 = vmax.f32 %v407, 0.0
    %413 = vset.pattern.permute.xlu0 0
    %414 = vperm.xlu0 %413, %v51
    %v415 = vpop.permute.xlu0 %414
    %vm417 = vcmask 130048
    %v419 = vsel %vm417, %v44, 0
    %421 = vmatprep.subr.mxu0 0.0
    %422 = vmatpush1.msra.mxu0 0.0
    %423 = vmatprep.subr.mxu0 0.0
    %424 = vmatpush1.msra.mxu0 0.0
    %425 = vmatprep.subr.mxu0 0.0
    %426 = vmatpush1.msra.mxu0 0.0
    %427 = vmatprep.subr.mxu0 0.0
    %428 = vmatpush1.msra.mxu0 0.0
    %429 = vmatprep.subr.mxu0 0.0
    %430 = vmatpush1.msra.mxu0 0.0
    %431 = vmatprep.subr.mxu0 0.0
    %432 = vmatpush1.msra.mxu0 0.0
    %433 = vmatprep.subr.mxu0 0.0
    %434 = vmatpush1.msra.mxu0 0.0
    %435 = vmatprep.subr.mxu0 0.0
    %436 = vmatpush1.msra.mxu0 0.0
    %437 = vmatprep.subr.mxu0 0.0
    %438 = vmatpush1.msra.mxu0 0.0
    %439 = vmatprep.subr.mxu0 0.0
    %440 = vmatpush1.msra.mxu0 0.0
    %441 = vmatprep.subr.mxu0 0.0
    %442 = vmatpush1.msra.mxu0 0.0
    %443 = vmatprep.subr.mxu0 0.0
    %444 = vmatpush1.msra.mxu0 0.0
    %445 = vmatprep.subr.mxu0 0.0
    %446 = vmatpush1.msra.mxu0 0.0
    %447 = vmatprep.subr.mxu0 0.0
    %448 = vmatpush1.msra.mxu0 0.0
    %449 = vmatprep.subr.mxu0 0.0
    %450 = vmatpush1.msra.mxu0 %v411
    %451 = vmatprep.subr.mxu0 0.0
    %452 = vmatpush1.msra.mxu0 %v410
    %453 = vmatprep.subr.mxu0 0.0
    %454 = vmatpush2.msra.mxu0 0.0
    %455 = vmatprep.subr.mxu0 0.0
    %456 = vmatpush2.msra.mxu0 0.0
    %457 = vmatprep.subr.mxu0 0.0
    %458 = vmatpush2.msra.mxu0 0.0
    %459 = vmatprep.subr.mxu0 0.0
    %460 = vmatpush2.msra.mxu0 0.0
    %461 = vmatprep.subr.mxu0 0.0
    %462 = vmatpush2.msra.mxu0 0.0
    %463 = vmatprep.subr.mxu0 0.0
    %464 = vmatpush2.msra.mxu0 0.0
    %465 = vmatprep.subr.mxu0 0.0
    %466 = vmatpush2.msra.mxu0 0.0
    %467 = vmatprep.subr.mxu0 0.0
    %468 = vmatpush2.msra.mxu0 0.0
    %469 = vmatprep.subr.mxu0 0.0
    %470 = vmatpush2.msra.mxu0 0.0
    %471 = vmatprep.subr.mxu0 0.0
    %472 = vmatpush2.msra.mxu0 0.0
    %473 = vmatprep.subr.mxu0 0.0
    %474 = vmatpush2.msra.mxu0 0.0
    %475 = vmatprep.subr.mxu0 0.0
    %476 = vmatpush2.msra.mxu0 0.0
    %477 = vmatprep.subr.mxu0 0.0
    %478 = vmatpush2.msra.mxu0 0.0
    %479 = vmatprep.subr.mxu0 0.0
    %480 = vmatpush2.msra.mxu0 0.0
    %481 = vmatprep.subr.mxu0 0.0
    %482 = vmatpush2.msra.mxu0 0.0
    %483 = vmatprep.subr.mxu0 0.0
    %484 = vmatpush2.msra.mxu0 0.0
    %485 = vmatprep.mubr.f32.mxu0 0.0
    %486 = vmatmul.mubr.f32.gmra.mxu0 %v419
    %v487 = vpop.f32.mrf.mxu0
    %v488 = vadd.f32 %v415, %v487
    %v489 = vpop.f32.mrf.mxu0
    %490 = vdwg.mxu0
    %v491 = vmax.f32 %v488, 0.0
    %493 = vset.pattern.permute.xlu0 0
    %494 = vperm.xlu0 %493, %v52
    %v495 = vpop.permute.xlu0 %494
    %v497 = vmul.f32 %v495, %v491
    %v498 = vrot.slane %v497, 4
    %v499 = vadd.f32 %v497, %v498
    %v500 = vrot.slane %v499, 2
    %v501 = vadd.f32 %v499, %v500
    %v502 = vrot.slane %v501, 1
    %v503 = vadd.f32 %v501, %v502
    %505 = vset.pattern.permute.xlu0 0
    %506 = vperm.xlu0 %505, %v53
    %v507 = vpop.permute.xlu0 %506
    %v509 = vadd.f32 %v503, %v507
    %510 = vst [vmem:[#allocation5] sm:$0x1] %v509
    // Predicated region
    $region18: #{tpu_custom_call.1} parent=1 // pred_check
      _
    $region19: #{tpu_custom_call.1} parent=1 // pred_check_branch
      %512 = sbr.rel (0) target = $region21
    $region20: #{tpu_custom_call.1} parent=1 // pred_region
      %s514 = ssub.s32 16, 16
      %515 = vsyncadd [#allocation4], %s514
      %s517 = sshll.u32 [#allocation5], 4
      %s518 = int_to_ptr.vmem [resolvable:$true] %s517
      %520 = dma.vmem_to_hbm [thread:$0]  %s518, 16, %s3, [#allocation4]
    $region21: #{tpu_custom_call.1} parent=1 // pred_fallthru
      _
    // Predicated region
    $region22: #{tpu_custom_call.1} parent=1 // pred_check
      _
    $region23: #{tpu_custom_call.1} parent=1 // pred_check_branch
      %522 = sbr.rel (0) target = $region25
    $region24: #{tpu_custom_call.1} parent=1 // pred_region
      %523 = dma.done [#allocation4], 16
    $region25: #{tpu_custom_call.1} parent=1 // pred_fallthru
      _
    %524 = vsyncpa [#allocation3], 1
    %525 = vsyncpa [#allocation4], 1

</llo_original>
